<compile_context>
chip_gen: v7x
topology: tpu7x:2x2x1
jax: 0.10.0
libtpu: 0.0.40
codegen_flags: <defaults>
</compile_context>

<pallas_src>
import jax
import jax.numpy as jnp
from jax.experimental import pallas as pl
from jax.experimental.pallas import tpu as pltpu


def _round_up(x, m):
    return ((x + m - 1) // m) * m


def _min_fc_kernel(nvalid_ref, u_ref, v_ref, w_ref, out_ref, part_ref):
    """One batch tile: constrain(W), min(u,v) . W, Frobenius partial sums."""
    u = u_ref[...]                                   # (TB, D) f32
    v = v_ref[...]                                   # (TB, D) f32
    w = w_ref[...]                                   # (1, D)  f32
    tb = u.shape[0]

    # constrain(): row-wise L2 norm, clamped below at 1, divide.  O(D)
    # recompute per grid step; negligible next to the (TB, D) streaming.
    nrm = jnp.sqrt(jnp.sum(w * w, axis=1, keepdims=True))        # (1, 1)
    wc = w / jnp.maximum(nrm, 1.0)                                # (1, D)

    # OPS['min'] elementwise, then the 1-output FC as a VPU broadcast-multiply
    # + lane reduction (no MXU push for N=1).  Store as a lane-dense (1, TB)
    # row; the (TB,)->(1,TB) relayout rides the XLU slot (free while DMA-bound).
    m = jnp.minimum(u, v)                                         # (TB, D)
    out_ref[...] = jnp.sum(m * wc, axis=1).reshape(1, tb)         # (1, TB)

    # Frobenius-norm partial sums, masked to valid rows: padded batch indices
    # gather real embedding rows and must not pollute the norms.
    row = pl.program_id(0) * tb + jax.lax.broadcasted_iota(jnp.int32, (tb, 1), 0)
    valid = (row < nvalid_ref[0]).astype(u.dtype)                 # (TB, 1)
    ssu = jnp.sum(u * u * valid)
    ssv = jnp.sum(v * v * valid)
    lane = jax.lax.broadcasted_iota(jnp.int32, (1, 2), 1)
    part_ref[...] = jnp.where(lane == 0, ssu, ssv)                # (1, 2) = [ssu, ssv]


def min_forward(users, items, user_emb, item_emb, fc_weight, reg, *, tile_b=4096):
    """users, items: int32 (B,); user_emb: (U, D); item_emb: (I, D);
    fc_weight: (1, D).  Returns (inferences (B, 1), regs scalar)."""
    B = users.shape[0]
    D = user_emb.shape[1]

    # --- batch tile selection -------------------------------------------------
    # A (tb, D=32) f32 block lane-pads to 128 lanes in VMEM -> tb*512 B/buffer;
    # tb=4096 -> 2 MiB/buffer, so 2 inputs x 2 pipeline buffers = 8 MiB, inside
    # v5e's 16 MiB default scoped VMEM.  Split into >=2 balanced tiles once the
    # batch is big enough so both v7x TensorCores get work ("parallel" axis).
    b8 = _round_up(max(B, 1), 8)
    if b8 <= tile_b:
        if b8 >= 2048:
            tb = _round_up(pl.cdiv(b8, 2), 8)          # 2 balanced tiles
        else:
            tb = b8                                    # toy sizes: single tile
    else:
        nt = max(2, pl.cdiv(b8, tile_b))
        tb = _round_up(pl.cdiv(b8, nt), 8)
    padded_b = _round_up(b8, tb)
    num_tiles = padded_b // tb

    # --- pad the cheap int32 index vectors (NOT the (B, D) embeddings) --------
    pad = padded_b - B
    if pad:
        users = jnp.pad(users, (0, pad))               # index 0 is a valid row;
        items = jnp.pad(items, (0, pad))               # masked out of the norms
    # Embedding gathers stay wrapper glue at these shapes (see TODO above).
    u = user_emb[users].astype(jnp.float32)            # (padded_b, D)
    v = item_emb[items].astype(jnp.float32)            # (padded_b, D)
    nvalid = jnp.array([B], dtype=jnp.int32)           # scalar-prefetched valid rows

    out_shapes = (
        jax.ShapeDtypeStruct((num_tiles, tb), jnp.float32),   # lane-dense inferences
        jax.ShapeDtypeStruct((num_tiles, 2), jnp.float32),    # per-tile [sum u^2, sum v^2]
    )

    lane_pad = max(D, 128)                              # current lane-padded traffic
    cost = pl.CostEstimate(
        flops=6 * padded_b * D,                         # min + mul + reduce + squares
        transcendentals=num_tiles,                      # weight-norm sqrt per tile
        bytes_accessed=(2 * padded_b * lane_pad * 4     # u, v reads (lane-padded)
                        + lane_pad * 4                  # fc weight
                        + padded_b * 4                  # inferences writeback
                        + num_tiles * 2 * 4),           # partials writeback
    )

    inf_tiles, parts = pl.pallas_call(
        _min_fc_kernel,
        out_shape=out_shapes,
        grid_spec=pltpu.PrefetchScalarGridSpec(
            num_scalar_prefetch=1,                      # nvalid -> SMEM
            grid=(num_tiles,),
            in_specs=[
                pl.BlockSpec((tb, D), lambda i, n: (i, 0)),    # u tile
                pl.BlockSpec((tb, D), lambda i, n: (i, 0)),    # v tile
                pl.BlockSpec((1, D), lambda i, n: (0, 0)),     # fc weight (resident)
            ],
            out_specs=[
                pl.BlockSpec((1, tb), lambda i, n: (i, 0)),    # inferences row
                pl.BlockSpec((1, 2), lambda i, n: (i, 0)),     # per-tile partials
            ],
        ),
        compiler_params=pltpu.CompilerParams(
            dimension_semantics=("parallel",)),
        cost_estimate=cost,
    )(nvalid, u, v, fc_weight)

    inferences = inf_tiles.reshape(padded_b, 1)[:B]
    regs = reg * (jnp.sqrt(jnp.sum(parts[:, 0])) + jnp.sqrt(jnp.sum(parts[:, 1])))
    return inferences, regs


def _reference(users, items, user_emb, item_emb, fc_weight, reg):
    u = user_emb[users]
    v = item_emb[items]
    nrm = jnp.maximum(jnp.linalg.norm(fc_weight, axis=1, keepdims=True), 1.0)
    wc = fc_weight / nrm
    inf = jnp.minimum(u, v) @ wc.T
    regs = reg * (jnp.linalg.norm(u) + jnp.linalg.norm(v))
    return inf, regs


if __name__ == "__main__":
    num_users, num_items, embedding_dim, reg = 10, 12, 32, 0.01
    batch = 8

    key = jax.random.PRNGKey(0)
    k_ue, k_ie, k_fc, k_u, k_i = jax.random.split(key, 5)

    user_emb = jax.random.normal(k_ue, (num_users, embedding_dim), jnp.float32)
    item_emb = jax.random.normal(k_ie, (num_items, embedding_dim), jnp.float32)
    fc_weight = jax.random.normal(k_fc, (1, embedding_dim), jnp.float32) * 0.1

    users = jax.random.randint(k_u, (batch,), 0, num_users, jnp.int32)
    items = jax.random.randint(k_i, (batch,), 0, num_items, jnp.int32)

    inferences, regs = min_forward(users, items, user_emb, item_emb, fc_weight, reg)
    jax.block_until_ready((inferences, regs))
    ref_inf, ref_regs = _reference(users, items, user_emb, item_emb, fc_weight, reg)
    assert inferences.shape == (batch, 1)
    assert jnp.allclose(inferences, ref_inf, atol=1e-5, rtol=1e-5)
    assert jnp.allclose(regs, ref_regs, atol=1e-5, rtol=1e-5)

    # Non-tile-multiple batch: exercises index padding + in-kernel row masking.
    users2 = jax.random.randint(k_u, (batch + 3,), 0, num_users, jnp.int32)
    items2 = jax.random.randint(k_i, (batch + 3,), 0, num_items, jnp.int32)
    inf2, regs2 = min_forward(users2, items2, user_emb, item_emb, fc_weight, reg)
    jax.block_until_ready((inf2, regs2))
    ref_inf2, ref_regs2 = _reference(users2, items2, user_emb, item_emb, fc_weight, reg)
    assert inf2.shape == (batch + 3, 1)
    assert jnp.allclose(inf2, ref_inf2, atol=1e-5, rtol=1e-5)
    assert jnp.allclose(regs2, ref_regs2, atol=1e-5, rtol=1e-5)

    # Multi-tile grid (tiny tile_b forces 3 tiles): exercises the lane-dense
    # (1, tb) output blocks, per-tile partials, and last-tile masking together.
    users3 = jax.random.randint(k_u, (40,), 0, num_users, jnp.int32)
    items3 = jax.random.randint(k_i, (40,), 0, num_items, jnp.int32)
    inf3, regs3 = min_forward(users3, items3, user_emb, item_emb, fc_weight, reg,
                              tile_b=16)
    jax.block_until_ready((inf3, regs3))
    ref_inf3, ref_regs3 = _reference(users3, items3, user_emb, item_emb, fc_weight, reg)
    assert inf3.shape == (40, 1)
    assert jnp.allclose(inf3, ref_inf3, atol=1e-5, rtol=1e-5)
    assert jnp.allclose(regs3, ref_regs3, atol=1e-5, rtol=1e-5)

    print("KERNEL_OK")
</pallas_src>

<mosaic_0001>
module attributes {stable_mosaic.version = 11 : i64} {
  func.func @_min_fc_kernel(%arg0: i32, %arg1: memref<1xi32, #tpu.memory_space<smem>>, %arg2: memref<8x32xf32, #tpu.memory_space<vmem>>, %arg3: memref<8x32xf32, #tpu.memory_space<vmem>>, %arg4: memref<1x32xf32, #tpu.memory_space<vmem>>, %arg5: memref<1x8xf32, #tpu.memory_space<vmem>>, %arg6: memref<1x2xf32, #tpu.memory_space<vmem>>) attributes {dimension_semantics = [#tpu.dimension_semantics<parallel>], iteration_bounds = array<i64: 1>, scalar_prefetch = 1 : i64, scratch_operands = 0 : i64, tpu.core_type = #tpu.core_type<tc>, window_params = [{transform_indices = @transform_0, window_bounds = array<i64: 8, 32>}, {transform_indices = @transform_1, window_bounds = array<i64: 8, 32>}, {pipeline_mode = #tpu.pipeline_mode<synchronous>, transform_indices = @transform_2, window_bounds = array<i64: 1, 32>}, {transform_indices = @transform_3, window_bounds = array<i64: 1, 8>}, {transform_indices = @transform_4, window_bounds = array<i64: 1, 2>}]} {
    %c0 = arith.constant 0 : index
    %c0_0 = arith.constant 0 : index
    %0 = vector.load %arg2[%c0, %c0_0] : memref<8x32xf32, #tpu.memory_space<vmem>>, vector<8x32xf32>
    %c0_1 = arith.constant 0 : index
    %c0_2 = arith.constant 0 : index
    %1 = vector.load %arg3[%c0_1, %c0_2] : memref<8x32xf32, #tpu.memory_space<vmem>>, vector<8x32xf32>
    %c0_3 = arith.constant 0 : index
    %c0_4 = arith.constant 0 : index
    %2 = vector.load %arg4[%c0_3, %c0_4] : memref<1x32xf32, #tpu.memory_space<vmem>>, vector<1x32xf32>
    %3 = arith.mulf %2, %2 : vector<1x32xf32>
    %cst = arith.constant dense<0.000000e+00> : vector<1xf32>
    %4 = vector.multi_reduction <add>, %3, %cst [1] : vector<1x32xf32> to vector<1xf32>
    %5 = vector.shape_cast %4 : vector<1xf32> to vector<1x1xf32>
    %6 = math.sqrt %5 : vector<1x1xf32>
    %cst_5 = arith.constant 1.000000e+00 : f32
    %7 = vector.broadcast %cst_5 : f32 to vector<1x1xf32>
    %8 = arith.maximumf %6, %7 : vector<1x1xf32>
    %9 = vector.broadcast %8 : vector<1x1xf32> to vector<1x32xf32>
    %10 = arith.divf %2, %9 : vector<1x32xf32>
    %11 = arith.minimumf %0, %1 : vector<8x32xf32>
    %12 = vector.broadcast %10 : vector<1x32xf32> to vector<8x32xf32>
    %13 = arith.mulf %11, %12 : vector<8x32xf32>
    %cst_6 = arith.constant dense<0.000000e+00> : vector<8xf32>
    %14 = vector.multi_reduction <add>, %13, %cst_6 [1] : vector<8x32xf32> to vector<8xf32>
    %15 = vector.shape_cast %14 : vector<8xf32> to vector<1x8xf32>
    %c0_7 = arith.constant 0 : index
    %c0_8 = arith.constant 0 : index
    %16 = vector.load %arg5[%c0_7, %c0_8] : memref<1x8xf32, #tpu.memory_space<vmem>>, vector<1x8xf32>
    tpu.vector_store %arg5[%c0_7, %c0_8], %15 {strides = array<i32>} : memref<1x8xf32, #tpu.memory_space<vmem>>, vector<1x8xf32>,
    %c8_i32 = arith.constant 8 : i32
    %17 = arith.muli %arg0, %c8_i32 : i32
    %18 = tpu.iota {dimensions = array<i32: 0>} : vector<8x1xi32>
    %19 = vector.broadcast %17 : i32 to vector<8x1xi32>
    %20 = arith.addi %19, %18 : vector<8x1xi32>
    %c0_9 = arith.constant 0 : index
    %21 = memref.load %arg1[%c0_9] : memref<1xi32, #tpu.memory_space<smem>>
    %22 = vector.broadcast %21 : i32 to vector<8x1xi32>
    %23 = arith.cmpi slt, %20, %22 : vector<8x1xi32>
    %24 = arith.extui %23 : vector<8x1xi1> to vector<8x1xi32>
    %25 = arith.sitofp %24 : vector<8x1xi32> to vector<8x1xf32>
    %26 = arith.mulf %0, %0 : vector<8x32xf32>
    %27 = vector.broadcast %25 : vector<8x1xf32> to vector<8x32xf32>
    %28 = arith.mulf %26, %27 : vector<8x32xf32>
    %29 = vector.shape_cast %28 : vector<8x32xf32> to vector<1x8x32xf32>
    %cst_10 = arith.constant dense<0.000000e+00> : vector<1xf32>
    %30 = vector.multi_reduction <add>, %29, %cst_10 [1, 2] : vector<1x8x32xf32> to vector<1xf32>
    %31 = vector.shape_cast %30 : vector<1xf32> to vector<1x1x1xf32>
    %32 = vector.extract %31[0, 0, 0] : f32 from vector<1x1x1xf32>
    %33 = arith.mulf %1, %1 : vector<8x32xf32>
    %34 = vector.broadcast %25 : vector<8x1xf32> to vector<8x32xf32>
    %35 = arith.mulf %33, %34 : vector<8x32xf32>
    %36 = vector.shape_cast %35 : vector<8x32xf32> to vector<1x8x32xf32>
    %cst_11 = arith.constant dense<0.000000e+00> : vector<1xf32>
    %37 = vector.multi_reduction <add>, %36, %cst_11 [1, 2] : vector<1x8x32xf32> to vector<1xf32>
    %38 = vector.shape_cast %37 : vector<1xf32> to vector<1x1x1xf32>
    %39 = vector.extract %38[0, 0, 0] : f32 from vector<1x1x1xf32>
    %40 = tpu.iota {dimensions = array<i32: 1>} : vector<1x2xi32>
    %c0_i32 = arith.constant 0 : i32
    %41 = vector.broadcast %c0_i32 : i32 to vector<1x2xi32>
    %42 = arith.cmpi eq, %40, %41 : vector<1x2xi32>
    %43 = vector.broadcast %32 : f32 to vector<1x2xf32>
    %44 = vector.broadcast %39 : f32 to vector<1x2xf32>
    %45 = arith.select %42, %43, %44 : vector<1x2xi1>, vector<1x2xf32>
    %c0_12 = arith.constant 0 : index
    %c0_13 = arith.constant 0 : index
    %46 = vector.load %arg6[%c0_12, %c0_13] : memref<1x2xf32, #tpu.memory_space<vmem>>, vector<1x2xf32>
    tpu.vector_store %arg6[%c0_12, %c0_13], %45 {strides = array<i32>} : memref<1x2xf32, #tpu.memory_space<vmem>>, vector<1x2xf32>,
    return
  }
  func.func @transform_0(%arg0: i32, %arg1: memref<1xi32, #tpu.memory_space<smem>>) -> (i32, i32) {
    %c0_i32 = arith.constant 0 : i32
    %c0_i32_0 = arith.constant 0 : i32
    return %arg0, %c0_i32 : i32, i32
  }
  func.func @transform_1(%arg0: i32, %arg1: memref<1xi32, #tpu.memory_space<smem>>) -> (i32, i32) {
    %c0_i32 = arith.constant 0 : i32
    %c0_i32_0 = arith.constant 0 : i32
    return %arg0, %c0_i32 : i32, i32
  }
  func.func @transform_2(%arg0: i32, %arg1: memref<1xi32, #tpu.memory_space<smem>>) -> (i32, i32) {
    %c0_i32 = arith.constant 0 : i32
    %c0_i32_0 = arith.constant 0 : i32
    %c0_i32_1 = arith.constant 0 : i32
    return %c0_i32, %c0_i32_0 : i32, i32
  }
  func.func @transform_3(%arg0: i32, %arg1: memref<1xi32, #tpu.memory_space<smem>>) -> (i32, i32) {
    %c0_i32 = arith.constant 0 : i32
    %c0_i32_0 = arith.constant 0 : i32
    return %arg0, %c0_i32 : i32, i32
  }
  func.func @transform_4(%arg0: i32, %arg1: memref<1xi32, #tpu.memory_space<smem>>) -> (i32, i32) {
    %c0_i32 = arith.constant 0 : i32
    %c0_i32_0 = arith.constant 0 : i32
    return %arg0, %c0_i32 : i32, i32
  }
}

</mosaic_0001>

<llo_original>
// kernel: tpu_custom_call.1
$region0: #{tpu_custom_call.1}
  #allocation0 [shape = 'u32[]', space=smem, size = 0x4, offset = 0x4, fixed_abs, tag = 'smem constant byte address 0x4 - core index']
  #allocation1 [shape = 'u32[144,128]{1,0:T(1,128)}', space=vmem, size = 0x12000, scoped, tag = 'internal scratch']
  #allocation2 [shape = 's32[1]{0}', space=sflag, size = 0x4, scoped, tag = 'scoped memory for tpu_custom_call.1']
  #allocation3 [shape = 's32[1]{0:T(128)S(6)}', space=smem, size = 0x200, scoped, tag = 'prefetched SMEM operand 0']
  %s0 = inlined_call_operand.<no memory space> [shape: s32[1], index: 0, kind: input, shape index: {}]
  %s1 = inlined_call_operand.hbm [shape: f32[8,32], index: 1, kind: input, shape index: {}]
  %s2 = inlined_call_operand.hbm [shape: f32[8,32], index: 2, kind: input, shape index: {}]
  %s3 = inlined_call_operand.vmem [shape: f32[1,32], index: 3, kind: input, shape index: {}]
  %s4 = inlined_call_operand.hbm [shape: f32[1,8], index: 4, kind: output, shape index: {0}]
  %s5 = inlined_call_operand.hbm [shape: f32[1,2], index: 5, kind: output, shape index: {1}]
  %6 = xla_tuple %s4, %s5
  %s7 = sld [smem:[#allocation0]]
  $region38: #{tpu_custom_call.1} parent=0
    _
  %s9 = ssub.s32 1, %s7
  %s10 = scalar_select 0, %s9, %s7
  %11 = sst [smem:[#allocation3]] %s0
  $region1: #{tpu_custom_call.1} parent=0
    #allocation4 [shape = 'u8[4096]{0}', space=vmem, size = 0x1000, scoped, tag = 'input window, operand 1, single buffered']
    #allocation5 [shape = 's32[1]{0}', space=sflag, size = 0x4, scoped, tag = 'scoped memory for tpu_custom_call.1']
    #allocation6 [shape = 's32[1]{0}', space=sflag, size = 0x4, scoped, tag = 'scoped memory for tpu_custom_call.1']
    #allocation7 [shape = 'u8[4096]{0}', space=vmem, size = 0x1000, scoped, tag = 'input window, operand 2, single buffered']
    #allocation8 [shape = 's32[1]{0}', space=sflag, size = 0x4, scoped, tag = 'scoped memory for tpu_custom_call.1']
    #allocation9 [shape = 'u8[512]{0}', space=vmem, size = 0x400, scoped, tag = 'output window, operand 0, single buffered']
    #allocation10 [shape = 'u8[512]{0}', space=vmem, size = 0x400, scoped, tag = 'output window, operand 1, single buffered']
    #allocation11 [shape = 's32[1]{0}', space=sflag, size = 0x4, scoped, tag = 'scoped memory for tpu_custom_call.1']
    %12 = vsyncpa [#allocation5], 0
    %13 = vsyncpa [#allocation8], 0
    %14 = vsyncpa [#allocation6], 0
    %15 = vsyncpa [#allocation11], 0
    // Predicated region
    $region2: #{tpu_custom_call.1} parent=1 // pred_check
      _
    $region3: #{tpu_custom_call.1} parent=1 // pred_check_branch
      %17 = sbr.rel (0) target = $region5
    $region4: #{tpu_custom_call.1} parent=1 // pred_region
      %s19 = ssub.s32 128, 128
      %20 = vsyncadd [#allocation5], %s19
      %s22 = sshll.u32 [#allocation4], 4
      %s23 = int_to_ptr.vmem [resolvable:$true] %s22
      %25 = dma.hbm_to_vmem [thread:$0]  %s1, 128, %s23, [#allocation5]
    $region5: #{tpu_custom_call.1} parent=1 // pred_fallthru
      _
    // Predicated region
    $region6: #{tpu_custom_call.1} parent=1 // pred_check
      _
    $region7: #{tpu_custom_call.1} parent=1 // pred_check_branch
      %27 = sbr.rel (0) target = $region9
    $region8: #{tpu_custom_call.1} parent=1 // pred_region
      %s29 = ssub.s32 128, 128
      %30 = vsyncadd [#allocation8], %s29
      %s32 = sshll.u32 [#allocation7], 4
      %s33 = int_to_ptr.vmem [resolvable:$true] %s32
      %35 = dma.hbm_to_vmem [thread:$0]  %s2, 128, %s33, [#allocation8]
    $region9: #{tpu_custom_call.1} parent=1 // pred_fallthru
      _
    // Predicated region
    $region10: #{tpu_custom_call.1} parent=1 // pred_check
      _
    $region11: #{tpu_custom_call.1} parent=1 // pred_check_branch
      %37 = sbr.rel (0) target = $region13
    $region12: #{tpu_custom_call.1} parent=1 // pred_region
      _
    $region13: #{tpu_custom_call.1} parent=1 // pred_fallthru
      _
    // Predicated region
    $region14: #{tpu_custom_call.1} parent=1 // pred_check
      _
    $region15: #{tpu_custom_call.1} parent=1 // pred_check_branch
      %39 = sbr.rel (0) target = $region17
    $region16: #{tpu_custom_call.1} parent=1 // pred_region
      %40 = dma.done [#allocation5], 128
    $region17: #{tpu_custom_call.1} parent=1 // pred_fallthru
      _
    // Predicated region
    $region18: #{tpu_custom_call.1} parent=1 // pred_check
      _
    $region19: #{tpu_custom_call.1} parent=1 // pred_check_branch
      %42 = sbr.rel (0) target = $region21
    $region20: #{tpu_custom_call.1} parent=1 // pred_region
      %43 = dma.done [#allocation8], 128
    $region21: #{tpu_custom_call.1} parent=1 // pred_fallthru
      _
    %v44 = vld [vmem:[#allocation4] sm:$0xff]
    %v45 = vld [vmem:[#allocation7] sm:$0xff]
    %v46 = vld [vmem:[%s3] sm:$0x1]
    %v47 = vmul.f32 %v46, %v46
    %vm48 = vcmask 253952
    %v49 = vsel %vm48, %v47, 0.0
    %50 = vadd.xlane.f32.xlu0 %v49
    %v51 = vpop.xlane.xlu0 %50
    %v52 = vrsqrt.pop %v51
    %v53 = vmul.f32 %v51, %v52
    %vm54 = vcmp.eq.f32.partialorder %v51, inf
    %v55 = vsel %vm54, %v51, %v53
    %vm56 = vcmp.eq.f32.partialorder %v51, 0.0
    %v57 = vand.u32 %v51, 2147483648
    %v58 = vsel %vm56, %v57, %v55
    %v59 = vmax.f32 %v58, 1.0
    %v60 = vrcp.pop %v59
    %v61 = vmul.f32 %v46, %v60
    %v62 = vmin.f32 %v44, %v45
    %v64 = vlaneseq
    %v65 = vshrl.u32 %v64, 7
    %v66 = vsub.s32 0, %v65
    %v67 = vrot.slane %v61, %v66
    %v69 = vmul.f32 %v62, %v67
    %vm70 = vcmask 261120
    %v71 = vsel %vm70, %v69, 0.0
    %72 = vadd.xlane.f32.xlu0 %v71
    %v73 = vpop.xlane.xlu0 %72
    %v75 = vlaneseq
    %v76 = vand.u32 %v75, 127
    %v77 = vlaneseq
    %v78 = vshrl.u32 %v77, 7
    %v79 = vsub.s32 %v76, %v78
    %v80 = vrot.slane %v73, %v79
    %vm82 = vcmask 57344
    %83 = vst.msk [vmem:[#allocation9] sm:$0x1] %vm82, %v80
    %s84 = smul.u32 0, 8
    %v85 = vlaneseq
    %v86 = vshrl.u32 %v85, 7
    %v87 = vstv %s84
    %v88 = vadd.s32 %v87, %v86
    %s89 = sld [smem:[#allocation3]]
    %v90 = vstv %s89
    %vm91 = vcmp.lt.s32.totalorder %v88, %v90
    %v92 = vsel %vm91, 1, 0
    %v93 = vcvt.s32.f32 %v92
    %v94 = vmul.f32 %v44, %v44
    %v95 = vmul.f32 %v94, %v93
    %v96 = vsel %vm70, %v95, 0.0
    %97 = vadd.xlane.f32.xlu0 %v96
    %v98 = vpop.xlane.xlu0 %97
    %v99 = vrot.slane %v98, 4
    %v100 = vadd.f32 %v98, %v99
    %v101 = vrot.slane %v100, 2
    %v102 = vadd.f32 %v100, %v101
    %v103 = vrot.slane %v102, 1
    %v104 = vadd.f32 %v102, %v103
    %s105 = vtos %v104
    %v106 = vmul.f32 %v45, %v45
    %v107 = vmul.f32 %v106, %v93
    %v108 = vsel %vm70, %v107, 0.0
    %109 = vadd.xlane.f32.xlu0 %v108
    %v110 = vpop.xlane.xlu0 %109
    %v111 = vrot.slane %v110, 4
    %v112 = vadd.f32 %v110, %v111
    %v113 = vrot.slane %v112, 2
    %v114 = vadd.f32 %v112, %v113
    %v115 = vrot.slane %v114, 1
    %v116 = vadd.f32 %v114, %v115
    %s117 = vtos %v116
    %vm118 = vcmp.eq.s32.totalorder %v76, 0
    %v119 = vstv %s105
    %v120 = vstv %s117
    %v121 = vsel %vm118, %v119, %v120
    %vm122 = vcmask 8192
    %123 = vst.msk [vmem:[#allocation10] sm:$0x1] %vm122, %v121
    // Predicated region
    $region22: #{tpu_custom_call.1} parent=1 // pred_check
      _
    $region23: #{tpu_custom_call.1} parent=1 // pred_check_branch
      %125 = sbr.rel (0) target = $region25
    $region24: #{tpu_custom_call.1} parent=1 // pred_region
      %s127 = ssub.s32 16, 16
      %128 = vsyncadd [#allocation6], %s127
      %s130 = sshll.u32 [#allocation9], 4
      %s131 = int_to_ptr.vmem [resolvable:$true] %s130
      %133 = dma.vmem_to_hbm [thread:$0]  %s131, 16, %s4, [#allocation6]
    $region25: #{tpu_custom_call.1} parent=1 // pred_fallthru
      _
    // Predicated region
    $region26: #{tpu_custom_call.1} parent=1 // pred_check
      _
    $region27: #{tpu_custom_call.1} parent=1 // pred_check_branch
      %135 = sbr.rel (0) target = $region29
    $region28: #{tpu_custom_call.1} parent=1 // pred_region
      %s137 = ssub.s32 16, 16
      %138 = vsyncadd [#allocation11], %s137
      %s140 = sshll.u32 [#allocation10], 4
      %s141 = int_to_ptr.vmem [resolvable:$true] %s140
      %143 = dma.vmem_to_hbm [thread:$0]  %s141, 16, %s5, [#allocation11]
    $region29: #{tpu_custom_call.1} parent=1 // pred_fallthru
      _
    // Predicated region
    $region30: #{tpu_custom_call.1} parent=1 // pred_check
      _
    $region31: #{tpu_custom_call.1} parent=1 // pred_check_branch
      %145 = sbr.rel (0) target = $region33
    $region32: #{tpu_custom_call.1} parent=1 // pred_region
      %146 = dma.done [#allocation6], 16
    $region33: #{tpu_custom_call.1} parent=1 // pred_fallthru
      _
    // Predicated region
    $region34: #{tpu_custom_call.1} parent=1 // pred_check
      _
    $region35: #{tpu_custom_call.1} parent=1 // pred_check_branch
      %148 = sbr.rel (0) target = $region37
    $region36: #{tpu_custom_call.1} parent=1 // pred_region
      %149 = dma.done [#allocation11], 16
    $region37: #{tpu_custom_call.1} parent=1 // pred_fallthru
      _
    %150 = vsyncpa [#allocation5], 1
    %151 = vsyncpa [#allocation8], 1
    %152 = vsyncpa [#allocation6], 1
    %153 = vsyncpa [#allocation11], 1

</llo_original>
